<compile_context>
chip_gen: v7x
topology: tpu7x:2x2x1
jax: 0.10.0
libtpu: 0.0.40
codegen_flags: <defaults>
</compile_context>

<pallas_src>
import functools

import jax
import jax.numpy as jnp
from jax import lax
from jax.experimental import pallas as pl
from jax.experimental.pallas import tpu as pltpu


def _block_kernel(xcol_ref, w_ref, scale_ref, shift_ref, out_ref, *, Q):
    """One grid step: conv(matmul) + bias/BN + ReLU + 2x2 max-pool.

    xcol_ref : (1, 4*Q, KP) bf16  im2col rows, ordered (pool_pos, b, hh, wh)
    w_ref    : (KP, COUT)   bf16  conv weights, K ordered (kh, kw, cin), zero-padded
    scale_ref: (1, COUT)    f32   gamma / sqrt(var + eps)
    shift_ref: (1, COUT)    f32   beta + (conv_b - mean) * scale
    out_ref  : (Q, COUT)    f32   pooled output rows, ordered (b, hh, wh)
    """
    xcol = xcol_ref[0]                                            # (4Q, KP)
    # Single MXU matmul, f32 accumulation (bf16 operands).
    acc = jnp.dot(xcol, w_ref[...], preferred_element_type=jnp.float32)  # (4Q, COUT)
    # Fused conv-bias + BatchNorm (running stats) + ReLU.
    y = jnp.maximum(acc * scale_ref[...] + shift_ref[...], 0.0)
    # MaxPool2d(2,2): rows were pre-ordered so the four pool positions are
    # contiguous Q-row blocks -> pure elementwise max, no relayout/scratch.
    p01 = jnp.maximum(y[0 * Q:1 * Q, :], y[1 * Q:2 * Q, :])
    p23 = jnp.maximum(y[2 * Q:3 * Q, :], y[3 * Q:4 * Q, :])
    out_ref[...] = jnp.maximum(p01, p23).astype(out_ref.dtype)


@jax.jit
def block_forward(x_nchw, conv_w, conv_b, gamma, beta, run_mean, run_var):
    eps = 1e-5
    N, CIN, H, W = x_nchw.shape
    COUT = conv_w.shape[0]
    assert H % 2 == 0 and W % 2 == 0, "MaxPool2d(2,2) path assumes even H, W"
    HH, WH = H // 2, W // 2
    K9 = 9 * CIN
    KP = ((K9 + 127) // 128) * 128            # lane-dense contraction dim

    # ---- samples per grid step -------------------------------------------
    # Amortize the ~0.35us/step pipeline overhead, keep >= 2 steps for v7x's
    # two TensorCores, and cap the block so (double-buffered) input blocks
    # stay well inside v5e's 16 MiB default scoped VMEM.
    bytes_per_sample = H * W * KP * 2          # bf16 im2col rows per sample
    b_cap = max(1, (4 << 20) // bytes_per_sample)
    B = min(max(1, N // 2), b_cap) if N >= 2 else 1
    while N % B != 0:
        B -= 1
    grid_n = N // B
    Q = B * HH * WH                            # pooled rows per grid step

    # ---- wrapper-side glue: NHWC, halo pad, im2col, pool-position reorder --
    x = jnp.transpose(x_nchw, (0, 2, 3, 1)).astype(jnp.float32)    # (N,H,W,CIN)
    xp = jnp.pad(x, ((0, 0), (1, 1), (1, 1), (0, 0)))              # (N,H+2,W+2,CIN)
    taps = [xp[:, kh:kh + H, kw:kw + W, :]                         # (N,H,W,CIN)
            for kh in range(3) for kw in range(3)]
    xcol = jnp.concatenate(taps, axis=-1)                          # (N,H,W,9*CIN)
    # Split (h, w) -> (hh, dh, wh, dw) and move the pool position (dh, dw) so
    # each grid step sees its four pool-position row blocks contiguously.
    xcol = xcol.reshape(N, HH, 2, WH, 2, K9)
    xcol = jnp.transpose(xcol, (2, 4, 0, 1, 3, 5))                 # (2,2,N,HH,WH,K9)
    xcol = xcol.reshape(4, grid_n, B, HH * WH, K9)
    xcol = jnp.transpose(xcol, (1, 0, 2, 3, 4))                    # (g,4,B,HH*WH,K9)
    xcol = xcol.reshape(grid_n, 4 * Q, K9)
    xcol = jnp.pad(xcol, ((0, 0), (0, 0), (0, KP - K9))).astype(jnp.bfloat16)

    # weights: (COUT,CIN,3,3) -> (9*CIN, COUT), K ordered (kh,kw,cin), padded K.
    w9 = jnp.transpose(conv_w, (2, 3, 1, 0)).reshape(K9, COUT)
    w9 = jnp.pad(w9, ((0, KP - K9), (0, 0))).astype(jnp.bfloat16)  # (KP, COUT)

    # fold conv bias + BN (eval mode) into per-channel scale/shift.
    inv_std = gamma / jnp.sqrt(run_var + eps)
    scale = inv_std.reshape(1, COUT).astype(jnp.float32)
    shift = (beta + (conv_b - run_mean) * inv_std).reshape(1, COUT).astype(jnp.float32)

    kernel = functools.partial(_block_kernel, Q=Q)

    out_flat = pl.pallas_call(
        kernel,
        out_shape=jax.ShapeDtypeStruct((N * HH * WH, COUT), jnp.float32),
        grid=(grid_n,),
        in_specs=[
            pl.BlockSpec((1, 4 * Q, KP), lambda i: (i, 0, 0)),     # im2col rows
            pl.BlockSpec((KP, COUT), lambda i: (0, 0)),            # weights (const)
            pl.BlockSpec((1, COUT), lambda i: (0, 0)),             # BN scale (const)
            pl.BlockSpec((1, COUT), lambda i: (0, 0)),             # BN shift (const)
        ],
        out_specs=pl.BlockSpec((Q, COUT), lambda i: (i, 0)),
        compiler_params=pltpu.CompilerParams(
            dimension_semantics=("parallel",)),
    )(xcol, w9, scale, shift)

    out = out_flat.reshape(N, HH, WH, COUT)
    return jnp.transpose(out, (0, 3, 1, 2))                        # NCHW


def _reference(x, conv_w, conv_b, gamma, beta, run_mean, run_var):
    eps = 1e-5
    conv = lax.conv_general_dilated(
        x, conv_w, window_strides=(1, 1), padding=((1, 1), (1, 1)),
        dimension_numbers=("NCHW", "OIHW", "NCHW"))
    conv = conv + conv_b[None, :, None, None]
    bn = (conv - run_mean[None, :, None, None]) / jnp.sqrt(
        run_var[None, :, None, None] + eps)
    bn = bn * gamma[None, :, None, None] + beta[None, :, None, None]
    relu = jnp.maximum(bn, 0.0)
    pool = lax.reduce_window(relu, -jnp.inf, lax.max,
                             (1, 1, 2, 2), (1, 1, 2, 2), "VALID")
    return pool


if __name__ == "__main__":
    N, n_in, n_out, H, W = 2, 4, 8, 16, 16

    key = jax.random.PRNGKey(0)
    k1, k2, k3, k4, k5 = jax.random.split(key, 5)
    conv_w = 0.1 * jax.random.normal(k1, (n_out, n_in, 3, 3), jnp.float32)
    conv_b = 0.05 * jax.random.normal(k2, (n_out,), jnp.float32)
    gamma = 1.0 + 0.1 * jax.random.normal(k3, (n_out,), jnp.float32)
    beta = 0.05 * jax.random.normal(k4, (n_out,), jnp.float32)
    run_mean = jnp.zeros((n_out,), jnp.float32)
    run_var = jnp.ones((n_out,), jnp.float32)

    x = jax.random.normal(k5, (N, n_in, H, W), jnp.float32)

    out = block_forward(x, conv_w, conv_b, gamma, beta, run_mean, run_var)
    out = jax.block_until_ready(out)

    ref = _reference(x, conv_w, conv_b, gamma, beta, run_mean, run_var)
    assert out.shape == (N, n_out, H // 2, W // 2), out.shape
    err = float(jnp.max(jnp.abs(out - ref)))
    # bf16 MXU operands (K = 9*CIN = 36) -> tolerance loosened vs pure f32.
    assert jnp.allclose(out, ref, atol=2e-2, rtol=2e-2), err

    print("KERNEL_OK")
</pallas_src>

<mosaic_0001>
module attributes {stable_mosaic.version = 11 : i64} {
  func.func @_block_kernel(%arg0: i32, %arg1: memref<1x256x128xbf16, #tpu.memory_space<vmem>>, %arg2: memref<128x8xbf16, #tpu.memory_space<vmem>>, %arg3: memref<1x8xf32, #tpu.memory_space<vmem>>, %arg4: memref<1x8xf32, #tpu.memory_space<vmem>>, %arg5: memref<64x8xf32, #tpu.memory_space<vmem>>) attributes {dimension_semantics = [#tpu.dimension_semantics<parallel>], iteration_bounds = array<i64: 2>, scalar_prefetch = 0 : i64, scratch_operands = 0 : i64, tpu.core_type = #tpu.core_type<tc>, window_params = [{transform_indices = @transform_0, window_bounds = array<i64: 1, 256, 128>}, {pipeline_mode = #tpu.pipeline_mode<synchronous>, transform_indices = @transform_1, window_bounds = array<i64: 128, 8>}, {pipeline_mode = #tpu.pipeline_mode<synchronous>, transform_indices = @transform_2, window_bounds = array<i64: 1, 8>}, {pipeline_mode = #tpu.pipeline_mode<synchronous>, transform_indices = @transform_3, window_bounds = array<i64: 1, 8>}, {transform_indices = @transform_4, window_bounds = array<i64: 64, 8>}]} {
    %c0 = arith.constant 0 : index
    %c0_0 = arith.constant 0 : index
    %c0_1 = arith.constant 0 : index
    %0 = vector.load %arg1[%c0, %c0_0, %c0_1] : memref<1x256x128xbf16, #tpu.memory_space<vmem>>, vector<1x256x128xbf16>
    %1 = vector.shape_cast %0 : vector<1x256x128xbf16> to vector<256x128xbf16>
    %c0_2 = arith.constant 0 : index
    %c0_3 = arith.constant 0 : index
    %2 = vector.load %arg2[%c0_2, %c0_3] : memref<128x8xbf16, #tpu.memory_space<vmem>>, vector<128x8xbf16>
    %cst = arith.constant dense<0.000000e+00> : vector<256x8xf32>
    %3 = tpu.matmul %1, %2, %cst {dimension_numbers = #tpu.dot_dimension_numbers<[1], [0], [0], [1], [0, 0, 1, 1], [], []>} : vector<256x128xbf16>, vector<128x8xbf16>, vector<256x8xf32> -> vector<256x8xf32>
    %c0_4 = arith.constant 0 : index
    %c0_5 = arith.constant 0 : index
    %4 = vector.load %arg3[%c0_4, %c0_5] : memref<1x8xf32, #tpu.memory_space<vmem>>, vector<1x8xf32>
    %5 = vector.broadcast %4 : vector<1x8xf32> to vector<256x8xf32>
    %6 = arith.mulf %3, %5 : vector<256x8xf32>
    %c0_6 = arith.constant 0 : index
    %c0_7 = arith.constant 0 : index
    %7 = vector.load %arg4[%c0_6, %c0_7] : memref<1x8xf32, #tpu.memory_space<vmem>>, vector<1x8xf32>
    %8 = vector.broadcast %7 : vector<1x8xf32> to vector<256x8xf32>
    %9 = arith.addf %6, %8 : vector<256x8xf32>
    %cst_8 = arith.constant 0.000000e+00 : f32
    %10 = vector.broadcast %cst_8 : f32 to vector<256x8xf32>
    %11 = arith.maximumf %9, %10 : vector<256x8xf32>
    %12 = vector.extract_strided_slice %11 {offsets = [0, 0], sizes = [64, 8], strides = [1, 1]} : vector<256x8xf32> to vector<64x8xf32>
    %13 = vector.extract_strided_slice %11 {offsets = [64, 0], sizes = [64, 8], strides = [1, 1]} : vector<256x8xf32> to vector<64x8xf32>
    %14 = arith.maximumf %12, %13 : vector<64x8xf32>
    %15 = vector.extract_strided_slice %11 {offsets = [128, 0], sizes = [64, 8], strides = [1, 1]} : vector<256x8xf32> to vector<64x8xf32>
    %16 = vector.extract_strided_slice %11 {offsets = [192, 0], sizes = [64, 8], strides = [1, 1]} : vector<256x8xf32> to vector<64x8xf32>
    %17 = arith.maximumf %15, %16 : vector<64x8xf32>
    %18 = arith.maximumf %14, %17 : vector<64x8xf32>
    %c0_9 = arith.constant 0 : index
    %c0_10 = arith.constant 0 : index
    %19 = vector.load %arg5[%c0_9, %c0_10] : memref<64x8xf32, #tpu.memory_space<vmem>>, vector<64x8xf32>
    tpu.vector_store %arg5[%c0_9, %c0_10], %18 {strides = array<i32>} : memref<64x8xf32, #tpu.memory_space<vmem>>, vector<64x8xf32>,
    return
  }
  func.func @transform_0(%arg0: i32) -> (i32, i32, i32) {
    %c0_i32 = arith.constant 0 : i32
    %c0_i32_0 = arith.constant 0 : i32
    %c0_i32_1 = arith.constant 0 : i32
    return %arg0, %c0_i32, %c0_i32_0 : i32, i32, i32
  }
  func.func @transform_1(%arg0: i32) -> (i32, i32) {
    %c0_i32 = arith.constant 0 : i32
    %c0_i32_0 = arith.constant 0 : i32
    %c0_i32_1 = arith.constant 0 : i32
    return %c0_i32, %c0_i32_0 : i32, i32
  }
  func.func @transform_2(%arg0: i32) -> (i32, i32) {
    %c0_i32 = arith.constant 0 : i32
    %c0_i32_0 = arith.constant 0 : i32
    %c0_i32_1 = arith.constant 0 : i32
    return %c0_i32, %c0_i32_0 : i32, i32
  }
  func.func @transform_3(%arg0: i32) -> (i32, i32) {
    %c0_i32 = arith.constant 0 : i32
    %c0_i32_0 = arith.constant 0 : i32
    %c0_i32_1 = arith.constant 0 : i32
    return %c0_i32, %c0_i32_0 : i32, i32
  }
  func.func @transform_4(%arg0: i32) -> (i32, i32) {
    %c0_i32 = arith.constant 0 : i32
    %c0_i32_0 = arith.constant 0 : i32
    return %arg0, %c0_i32 : i32, i32
  }
}

</mosaic_0001>

<llo_original>
// kernel: block_forward.1
$region0: #{block_forward.1}
  #allocation0 [shape = 'u32[]', space=smem, size = 0x4, offset = 0x4, fixed_abs, tag = 'smem constant byte address 0x4 - core index']
  #allocation1 [shape = 'u32[144,128]{1,0:T(1,128)}', space=vmem, size = 0x12000, scoped, tag = 'internal scratch']
  %s0 = inlined_call_operand.vmem [shape: bf16[2,256,128], index: 0, kind: input, shape index: {}]
  %s1 = inlined_call_operand.vmem [shape: bf16[128,8], index: 1, kind: input, shape index: {}]
  %s2 = inlined_call_operand.vmem [shape: f32[1,8], index: 2, kind: input, shape index: {}]
  %s3 = inlined_call_operand.vmem [shape: f32[1,8], index: 3, kind: input, shape index: {}]
  %s4 = inlined_call_operand.vmem [shape: f32[128,8], index: 4, kind: output, shape index: {}]
  %s5 = sld [smem:[#allocation0]]
  $region49: #{block_forward.1} parent=0
    _
  %s7 = ssub.s32 1, %s5
  %s8 = scalar_select 0, %s7, %s5
  loop: start=0, step=1, limit=4
  $region2: #{block_forward.1} parent=0 // loop_pre_header
    _
  $region3: #{block_forward.1} parent=0 // loop_header
    %s10 = sphi 0, %s14
    %p11 = scmp.ge.s32.totalorder %s10, 4
    %s20 = sphi 0, %s22
    %s23 = sphi 0, %s20
    %s24 = sphi 0, %s23
    %s40 = sphi 0, %s24
    %s44 = sphi 0, %s44
    %s46 = sphi 0, %s44
    %s47 = sphi 0, %s46
    %s61 = sphi 0, %s47
    %s65 = sphi 0, %s65
    %s67 = sphi 0, %s65
    %s68 = sphi 0, %s67
    %s82 = sphi 0, %s68
    %s86 = sphi 0, %s86
    %s88 = sphi 0, %s86
    %s89 = sphi 0, %s88
    %s103 = sphi 0, %s89
    %s109 = sphi 0, %s111
    %s112 = sphi 0, %s109
    %s113 = sphi 0, %s112
    %s129 = sphi 0, %s113
  $region4: #{block_forward.1} parent=0 // loop_header_branch
    %13 = sbr.rel (%p11) target = $region8
  $region5: #{block_forward.1} parent=0 // loop_body
    %s15 = ssub.s32 %s10, 1
    %s16 = ssub.s32 %s10, 2
    %s17 = sadd.s32 %s10, 1
    %s18 = ssub.s32 %s10, %s17
    %p19 = scmp.eq.s32.totalorder %s18, 0
    %s21 = sadd.s32 %s20, 1
    %s22 = scalar_select %p19, %s20, %s21
    %p25 = pneg %p19
    %p26 = scmp.eq.s32.totalorder %s10, 1
    %p27 = por %p25, %p26
    %p28 = scmp.ne.s32.totalorder %s20, %s23
    %p29 = scmp.eq.s32.totalorder %s10, 0
    %p30 = por %p28, %p29
    %p31 = scmp.ne.s32.totalorder %s20, %s23
    %p32 = scmp.eq.s32.totalorder %s15, 1
    %p33 = por %p31, %p32
    %p34 = scmp.ne.s32.totalorder %s23, %s24
    %p35 = scmp.eq.s32.totalorder %s15, 0
    %p36 = por %p34, %p35
    %p37 = scmp.ne.s32.totalorder %s23, %s24
    %p38 = scmp.eq.s32.totalorder %s16, 1
    %p39 = por %p37, %p38
    %p41 = scmp.ne.s32.totalorder %s24, %s40
    %p42 = scmp.eq.s32.totalorder %s16, 0
    %p43 = por %p41, %p42
    %s45 = sadd.s32 %s44, 1
    %p48 = scmp.eq.s32.totalorder %s10, 1
    %p49 = scmp.ne.s32.totalorder %s44, %s46
    %p50 = scmp.eq.s32.totalorder %s10, 0
    %p51 = por %p49, %p50
    %p52 = scmp.ne.s32.totalorder %s44, %s46
    %p53 = scmp.eq.s32.totalorder %s15, 1
    %p54 = por %p52, %p53
    %p55 = scmp.ne.s32.totalorder %s46, %s47
    %p56 = scmp.eq.s32.totalorder %s15, 0
    %p57 = por %p55, %p56
    %p58 = scmp.ne.s32.totalorder %s46, %s47
    %p59 = scmp.eq.s32.totalorder %s16, 1
    %p60 = por %p58, %p59
    %p62 = scmp.ne.s32.totalorder %s47, %s61
    %p63 = scmp.eq.s32.totalorder %s16, 0
    %p64 = por %p62, %p63
    %s66 = sadd.s32 %s65, 1
    %p69 = scmp.eq.s32.totalorder %s10, 1
    %p70 = scmp.ne.s32.totalorder %s65, %s67
    %p71 = scmp.eq.s32.totalorder %s10, 0
    %p72 = por %p70, %p71
    %p73 = scmp.ne.s32.totalorder %s65, %s67
    %p74 = scmp.eq.s32.totalorder %s15, 1
    %p75 = por %p73, %p74
    %p76 = scmp.ne.s32.totalorder %s67, %s68
    %p77 = scmp.eq.s32.totalorder %s15, 0
    %p78 = por %p76, %p77
    %p79 = scmp.ne.s32.totalorder %s67, %s68
    %p80 = scmp.eq.s32.totalorder %s16, 1
    %p81 = por %p79, %p80
    %p83 = scmp.ne.s32.totalorder %s68, %s82
    %p84 = scmp.eq.s32.totalorder %s16, 0
    %p85 = por %p83, %p84
    %s87 = sadd.s32 %s86, 1
    %p90 = scmp.eq.s32.totalorder %s10, 1
    %p91 = scmp.ne.s32.totalorder %s86, %s88
    %p92 = scmp.eq.s32.totalorder %s10, 0
    %p93 = por %p91, %p92
    %p94 = scmp.ne.s32.totalorder %s86, %s88
    %p95 = scmp.eq.s32.totalorder %s15, 1
    %p96 = por %p94, %p95
    %p97 = scmp.ne.s32.totalorder %s88, %s89
    %p98 = scmp.eq.s32.totalorder %s15, 0
    %p99 = por %p97, %p98
    %p100 = scmp.ne.s32.totalorder %s88, %s89
    %p101 = scmp.eq.s32.totalorder %s16, 1
    %p102 = por %p100, %p101
    %p104 = scmp.ne.s32.totalorder %s89, %s103
    %p105 = scmp.eq.s32.totalorder %s16, 0
    %p106 = por %p104, %p105
    %s107 = ssub.s32 %s10, %s17
    %p108 = scmp.eq.s32.totalorder %s107, 0
    %s110 = sadd.s32 %s109, 1
    %s111 = scalar_select %p108, %s109, %s110
    %p114 = pneg %p108
    %p115 = scmp.eq.s32.totalorder %s10, 1
    %p116 = por %p114, %p115
    %p117 = scmp.ne.s32.totalorder %s109, %s112
    %p118 = scmp.eq.s32.totalorder %s10, 0
    %p119 = por %p117, %p118
    %p120 = scmp.ne.s32.totalorder %s109, %s112
    %p121 = scmp.eq.s32.totalorder %s15, 1
    %p122 = por %p120, %p121
    %p123 = scmp.ne.s32.totalorder %s112, %s113
    %p124 = scmp.eq.s32.totalorder %s15, 0
    %p125 = por %p123, %p124
    %p126 = scmp.ne.s32.totalorder %s112, %s113
    %p127 = scmp.eq.s32.totalorder %s16, 1
    %p128 = por %p126, %p127
    %p130 = scmp.ne.s32.totalorder %s113, %s129
    %p131 = scmp.eq.s32.totalorder %s16, 0
    %p132 = por %p130, %p131
    %p133 = scmp.le.s32.totalorder 1, %s10
    %p134 = scmp.lt.s32.totalorder %s10, 3
    %p135 = pnand %p133, %p134
    %p136 = pneg %p135
    // Predicated region
    $region9: #{block_forward.1} parent=5 // pred_check
      _
    $region10: #{block_forward.1} parent=5 // pred_check_branch
      %138 = sbr.rel (%p135) target = $region12
    $region11: #{block_forward.1} parent=5 // pred_region
      %s139 = ssub.s32 %s10, 1
      // Predicated region
      $region13: #{block_forward.1} parent=11 // pred_check
        %p140 = pneg %p57
      $region14: #{block_forward.1} parent=11 // pred_check_branch
        %142 = sbr.rel (%p140) target = $region16
      $region15: #{block_forward.1} parent=11 // pred_region
        _
      $region16: #{block_forward.1} parent=11 // pred_fallthru
        _
      // Predicated region
      $region17: #{block_forward.1} parent=11 // pred_check
        %p143 = pneg %p78
      $region18: #{block_forward.1} parent=11 // pred_check_branch
        %145 = sbr.rel (%p143) target = $region20
      $region19: #{block_forward.1} parent=11 // pred_region
        _
      $region20: #{block_forward.1} parent=11 // pred_fallthru
        _
      // Predicated region
      $region21: #{block_forward.1} parent=11 // pred_check
        %p146 = pneg %p99
      $region22: #{block_forward.1} parent=11 // pred_check_branch
        %148 = sbr.rel (%p146) target = $region24
      $region23: #{block_forward.1} parent=11 // pred_region
        _
      $region24: #{block_forward.1} parent=11 // pred_fallthru
        _
    $region12: #{block_forward.1} parent=5 // pred_fallthru
      _
    %p149 = scmp.lt.s32.totalorder %s10, 2
    // Predicated region
    $region25: #{block_forward.1} parent=5 // pred_check
      %p150 = pneg %p149
    $region26: #{block_forward.1} parent=5 // pred_check_branch
      %152 = sbr.rel (%p150) target = $region28
    $region27: #{block_forward.1} parent=5 // pred_region
      // Predicated region
      $region29: #{block_forward.1} parent=27 // pred_check
        %p153 = pneg %p30
      $region30: #{block_forward.1} parent=27 // pred_check_branch
        %155 = sbr.rel (%p153) target = $region32
      $region31: #{block_forward.1} parent=27 // pred_region
        %p156 = scmp.lt.s32.totalorder %s10, 1
        %s157 = scalar_select %p156, %s10, 1
        %s158 = smul.addr %s157, 32
        %s159 = smul.addr %s158, 4
        %s160 = scalar_lea.vmem %s0, %s159
      $region32: #{block_forward.1} parent=27 // pred_fallthru
        _
    $region28: #{block_forward.1} parent=5 // pred_fallthru
      _
    %p161 = scmp.le.s32.totalorder 1, %s10
    %p162 = scmp.lt.s32.totalorder %s10, 3
    %p163 = pnand %p161, %p162
    %p164 = pneg %p163
    // Predicated region
    $region33: #{block_forward.1} parent=5 // pred_check
      _
    $region34: #{block_forward.1} parent=5 // pred_check_branch
      %166 = sbr.rel (%p163) target = $region36
    $region35: #{block_forward.1} parent=5 // pred_region
      %s167 = ssub.s32 %s10, 1
      %p168 = scmp.lt.s32.totalorder %s15, 1
      %s169 = scalar_select %p168, %s15, 1
      %s170 = smul.addr %s169, 32
      %s171 = smul.addr %s170, 4
      %s172 = scalar_lea.vmem %s0, %s171
      %p173 = pneg %p36
      %p174 = pneg %p33
      %p175 = pneg %p57
      %p176 = pneg %p54
      %p177 = pneg %p78
      %p178 = pneg %p75
      %p179 = pneg %p99
      %p180 = pneg %p96
      %p181 = pneg %p125
      %p182 = pneg %p122
      %s183 = smul.u32 8, %s15
      %p184 = scmp.lt.s32.totalorder %s183, 15
      %s185 = scalar_select %p184, %s183, 15
      %s186 = smul.addr %s185, 8
      %s187 = scalar_lea.vmem %s4, %s186
      %p188 = scmp.lt.s32.totalorder %s15, 1
      %s189 = scalar_select %p188, %s15, 1
      %s190 = smul.addr %s189, 32
      %s191 = smul.addr %s190, 4
      %s192 = scalar_lea.vmem %s0, %s191
      %s193 = smul.u32 8, %s15
      %p194 = scmp.lt.s32.totalorder %s193, 15
      %s195 = scalar_select %p194, %s193, 15
      %s196 = smul.addr %s195, 8
      %s197 = scalar_lea.vmem %s4, %s196
      %s198 = smul.u32 8, %s15
      %v200 = vld [vmem:[%s192] sm:$0xf]
      %v201 = vld [vmem:[%s192 + $0x4] sm:$0xf]
      %v202 = vld [vmem:[%s192 + $0x8] sm:$0xf]
      %v203 = vld [vmem:[%s192 + $0xc] sm:$0xf]
      %v204 = vld [vmem:[%s192 + $0x10] sm:$0xf]
      %v205 = vld [vmem:[%s192 + $0x14] sm:$0xf]
      %v206 = vld [vmem:[%s192 + $0x18] sm:$0xf]
      %v207 = vld [vmem:[%s192 + $0x1c] sm:$0xf]
      %v208 = vld [vmem:[%s192 + $0x20] sm:$0xf]
      %v209 = vld [vmem:[%s192 + $0x24] sm:$0xf]
      %v210 = vld [vmem:[%s192 + $0x28] sm:$0xf]
      %v211 = vld [vmem:[%s192 + $0x2c] sm:$0xf]
      %v212 = vld [vmem:[%s192 + $0x30] sm:$0xf]
      %v213 = vld [vmem:[%s192 + $0x34] sm:$0xf]
      %v214 = vld [vmem:[%s192 + $0x38] sm:$0xf]
      %v215 = vld [vmem:[%s192 + $0x3c] sm:$0xf]
      %v216 = vld [vmem:[%s192 + $0x40] sm:$0xf]
      %v217 = vld [vmem:[%s192 + $0x44] sm:$0xf]
      %v218 = vld [vmem:[%s192 + $0x48] sm:$0xf]
      %v219 = vld [vmem:[%s192 + $0x4c] sm:$0xf]
      %v220 = vld [vmem:[%s192 + $0x50] sm:$0xf]
      %v221 = vld [vmem:[%s192 + $0x54] sm:$0xf]
      %v222 = vld [vmem:[%s192 + $0x58] sm:$0xf]
      %v223 = vld [vmem:[%s192 + $0x5c] sm:$0xf]
      %v224 = vld [vmem:[%s192 + $0x60] sm:$0xf]
      %v225 = vld [vmem:[%s192 + $0x64] sm:$0xf]
      %v226 = vld [vmem:[%s192 + $0x68] sm:$0xf]
      %v227 = vld [vmem:[%s192 + $0x6c] sm:$0xf]
      %v228 = vld [vmem:[%s192 + $0x70] sm:$0xf]
      %v229 = vld [vmem:[%s192 + $0x74] sm:$0xf]
      %v230 = vld [vmem:[%s192 + $0x78] sm:$0xf]
      %v231 = vld [vmem:[%s192 + $0x7c] sm:$0xf]
      %v232 = vld [vmem:[%s1] sm:$0xf]
      %v233 = vld [vmem:[%s1 + $0x4] sm:$0xf]
      %v234 = vld [vmem:[%s1 + $0x8] sm:$0xf]
      %v235 = vld [vmem:[%s1 + $0xc] sm:$0xf]
      %v236 = vld [vmem:[%s1 + $0x10] sm:$0xf]
      %v237 = vld [vmem:[%s1 + $0x14] sm:$0xf]
      %v238 = vld [vmem:[%s1 + $0x18] sm:$0xf]
      %v239 = vld [vmem:[%s1 + $0x1c] sm:$0xf]
      %v240 = vld [vmem:[%s1 + $0x20] sm:$0xf]
      %v241 = vld [vmem:[%s1 + $0x24] sm:$0xf]
      %v242 = vld [vmem:[%s1 + $0x28] sm:$0xf]
      %v243 = vld [vmem:[%s1 + $0x2c] sm:$0xf]
      %v244 = vld [vmem:[%s1 + $0x30] sm:$0xf]
      %v245 = vld [vmem:[%s1 + $0x34] sm:$0xf]
      %v246 = vld [vmem:[%s1 + $0x38] sm:$0xf]
      %v247 = vld [vmem:[%s1 + $0x3c] sm:$0xf]
      %v280 = vunpack.c.l.b16 %v200
      %v281 = vunpack.c.l.b16 %v201
      %v282 = vunpack.c.l.b16 %v202
      %v283 = vunpack.c.l.b16 %v203
      %v284 = vunpack.c.l.b16 %v204
      %v285 = vunpack.c.l.b16 %v205
      %v286 = vunpack.c.l.b16 %v206
      %v287 = vunpack.c.l.b16 %v207
      %v288 = vunpack.c.l.b16 %v208
      %v289 = vunpack.c.l.b16 %v209
      %v290 = vunpack.c.l.b16 %v210
      %v291 = vunpack.c.l.b16 %v211
      %v292 = vunpack.c.l.b16 %v212
      %v293 = vunpack.c.l.b16 %v213
      %v294 = vunpack.c.l.b16 %v214
      %v295 = vunpack.c.l.b16 %v215
      %v296 = vunpack.c.l.b16 %v216
      %v297 = vunpack.c.l.b16 %v217
      %v298 = vunpack.c.l.b16 %v218
      %v299 = vunpack.c.l.b16 %v219
      %v300 = vunpack.c.l.b16 %v220
      %v301 = vunpack.c.l.b16 %v221
      %v302 = vunpack.c.l.b16 %v222
      %v303 = vunpack.c.l.b16 %v223
      %v304 = vunpack.c.l.b16 %v224
      %v305 = vunpack.c.l.b16 %v225
      %v306 = vunpack.c.l.b16 %v226
      %v307 = vunpack.c.l.b16 %v227
      %v308 = vunpack.c.l.b16 %v228
      %v309 = vunpack.c.l.b16 %v229
      %v310 = vunpack.c.l.b16 %v230
      %v311 = vunpack.c.l.b16 %v231
      %v312 = vpack.c.b16 %v281, %v280
      %v313 = vpack.c.b16 %v283, %v282
      %v314 = vpack.c.b16 %v285, %v284
      %v315 = vpack.c.b16 %v287, %v286
      %v316 = vpack.c.b16 %v289, %v288
      %v317 = vpack.c.b16 %v291, %v290
      %v318 = vpack.c.b16 %v293, %v292
      %v319 = vpack.c.b16 %v295, %v294
      %v320 = vpack.c.b16 %v297, %v296
      %v321 = vpack.c.b16 %v299, %v298
      %v322 = vpack.c.b16 %v301, %v300
      %v323 = vpack.c.b16 %v303, %v302
      %v324 = vpack.c.b16 %v305, %v304
      %v325 = vpack.c.b16 %v307, %v306
      %v326 = vpack.c.b16 %v309, %v308
      %v327 = vpack.c.b16 %v311, %v310
      %v360 = vunpack.c.l.b16 %v232
      %v361 = vunpack.c.l.b16 %v233
      %v362 = vunpack.c.l.b16 %v234
      %v363 = vunpack.c.l.b16 %v235
      %v364 = vunpack.c.l.b16 %v236
      %v365 = vunpack.c.l.b16 %v237
      %v366 = vunpack.c.l.b16 %v238
      %v367 = vunpack.c.l.b16 %v239
      %v368 = vunpack.c.l.b16 %v240
      %v369 = vunpack.c.l.b16 %v241
      %v370 = vunpack.c.l.b16 %v242
      %v371 = vunpack.c.l.b16 %v243
      %v372 = vunpack.c.l.b16 %v244
      %v373 = vunpack.c.l.b16 %v245
      %v374 = vunpack.c.l.b16 %v246
      %v375 = vunpack.c.l.b16 %v247
      %v376 = vpack.c.b16 %v361, %v360
      %v377 = vpack.c.b16 %v363, %v362
      %v378 = vpack.c.b16 %v365, %v364
      %v379 = vpack.c.b16 %v367, %v366
      %v380 = vpack.c.b16 %v369, %v368
      %v381 = vpack.c.b16 %v371, %v370
      %v382 = vpack.c.b16 %v373, %v372
      %v383 = vpack.c.b16 %v375, %v374
      %392 = vmatprep.subr.bf16.mxu0 0
      %393 = vmatpush1.bf16.msra.mxu0 %v376
      %394 = vmatprep.subr.bf16.mxu0 0
      %395 = vmatpush1.bf16.msra.mxu0 %v377
      %396 = vmatprep.subr.bf16.mxu0 0
      %397 = vmatpush1.bf16.msra.mxu0 %v378
      %398 = vmatprep.subr.bf16.mxu0 0
      %399 = vmatpush1.bf16.msra.mxu0 %v379
      %400 = vmatprep.subr.bf16.mxu0 0
      %401 = vmatpush1.bf16.msra.mxu0 %v380
      %402 = vmatprep.subr.bf16.mxu0 0
      %403 = vmatpush1.bf16.msra.mxu0 %v381
      %404 = vmatprep.subr.bf16.mxu0 0
      %405 = vmatpush1.bf16.msra.mxu0 %v382
      %406 = vmatprep.subr.bf16.mxu0 0
      %407 = vmatpush1.bf16.msra.mxu0 %v383
      %408 = vmatprep.subr.bf16.mxu0 0
      %409 = vmatpush1.bf16.msra.mxu0 0
      %410 = vmatprep.subr.bf16.mxu0 0
      %411 = vmatpush1.bf16.msra.mxu0 0
      %412 = vmatprep.subr.bf16.mxu0 0
      %413 = vmatpush1.bf16.msra.mxu0 0
      %414 = vmatprep.subr.bf16.mxu0 0
      %415 = vmatpush1.bf16.msra.mxu0 0
      %416 = vmatprep.subr.bf16.mxu0 0
      %417 = vmatpush1.bf16.msra.mxu0 0
      %418 = vmatprep.subr.bf16.mxu0 0
      %419 = vmatpush1.bf16.msra.mxu0 0
      %420 = vmatprep.subr.bf16.mxu0 0
      %421 = vmatpush1.bf16.msra.mxu0 0
      %422 = vmatprep.subr.bf16.mxu0 0
      %423 = vmatpush1.bf16.msra.mxu0 0
      %424 = vmatprep.mubr.bf16.mxu0 0
      %425 = vmatmul.mubr.bf16.gmra.mrb[0].mxu0 %v312
      %v426 = vpop.f32.mrb[0].mxu0
      %v427 = vadd.f32 0.0, %v426
      %v428 = vpop.f32.mrb[0].mxu0
      %v429 = vpop.f32.mrb[0].mxu0
      %v430 = vadd.f32 0.0, %v429
      %v431 = vpop.f32.mrb[0].mxu0
      %432 = vmatprep.mubr.bf16.mxu0 0
      %433 = vmatmul.mubr.bf16.gmra.mrb[0].mxu0 %v313
      %v434 = vpop.f32.mrb[0].mxu0
      %v435 = vadd.f32 0.0, %v434
      %v436 = vpop.f32.mrb[0].mxu0
      %v437 = vpop.f32.mrb[0].mxu0
      %v438 = vadd.f32 0.0, %v437
      %v439 = vpop.f32.mrb[0].mxu0
      %440 = vmatprep.mubr.bf16.mxu0 0
      %441 = vmatmul.mubr.bf16.gmra.mrb[0].mxu0 %v314
      %v442 = vpop.f32.mrb[0].mxu0
      %v443 = vadd.f32 0.0, %v442
      %v444 = vpop.f32.mrb[0].mxu0
      %v445 = vpop.f32.mrb[0].mxu0
      %v446 = vadd.f32 0.0, %v445
      %v447 = vpop.f32.mrb[0].mxu0
      %448 = vmatprep.mubr.bf16.mxu0 0
      %449 = vmatmul.mubr.bf16.gmra.mrb[0].mxu0 %v315
      %v450 = vpop.f32.mrb[0].mxu0
      %v451 = vadd.f32 0.0, %v450
      %v452 = vpop.f32.mrb[0].mxu0
      %v453 = vpop.f32.mrb[0].mxu0
      %v454 = vadd.f32 0.0, %v453
      %v455 = vpop.f32.mrb[0].mxu0
      %456 = vmatprep.mubr.bf16.mxu0 0
      %457 = vmatmul.mubr.bf16.gmra.mrb[0].mxu0 %v316
      %v458 = vpop.f32.mrb[0].mxu0
      %v459 = vadd.f32 0.0, %v458
      %v460 = vpop.f32.mrb[0].mxu0
      %v461 = vpop.f32.mrb[0].mxu0
      %v462 = vadd.f32 0.0, %v461
      %v463 = vpop.f32.mrb[0].mxu0
      %464 = vmatprep.mubr.bf16.mxu0 0
      %465 = vmatmul.mubr.bf16.gmra.mrb[0].mxu0 %v317
      %v466 = vpop.f32.mrb[0].mxu0
      %v467 = vadd.f32 0.0, %v466
      %v468 = vpop.f32.mrb[0].mxu0
      %v469 = vpop.f32.mrb[0].mxu0
      %v470 = vadd.f32 0.0, %v469
      %v471 = vpop.f32.mrb[0].mxu0
      %472 = vmatprep.mubr.bf16.mxu0 0
      %473 = vmatmul.mubr.bf16.gmra.mrb[0].mxu0 %v318
      %v474 = vpop.f32.mrb[0].mxu0
      %v475 = vadd.f32 0.0, %v474
      %v476 = vpop.f32.mrb[0].mxu0
      %v477 = vpop.f32.mrb[0].mxu0
      %v478 = vadd.f32 0.0, %v477
      %v479 = vpop.f32.mrb[0].mxu0
      %480 = vmatprep.mubr.bf16.mxu0 0
      %481 = vmatmul.mubr.bf16.gmra.mrb[0].mxu0 %v319
      %v482 = vpop.f32.mrb[0].mxu0
      %v483 = vadd.f32 0.0, %v482
      %v484 = vpop.f32.mrb[0].mxu0
      %v485 = vpop.f32.mrb[0].mxu0
      %v486 = vadd.f32 0.0, %v485
      %v487 = vpop.f32.mrb[0].mxu0
      %488 = vmatprep.mubr.bf16.mxu0 0
      %489 = vmatmul.mubr.bf16.gmra.mrb[0].mxu0 %v320
      %v490 = vpop.f32.mrb[0].mxu0
      %v491 = vadd.f32 0.0, %v490
      %v492 = vpop.f32.mrb[0].mxu0
      %v493 = vpop.f32.mrb[0].mxu0
      %v494 = vadd.f32 0.0, %v493
      %v495 = vpop.f32.mrb[0].mxu0
      %496 = vmatprep.mubr.bf16.mxu0 0
      %497 = vmatmul.mubr.bf16.gmra.mrb[0].mxu0 %v321
      %v498 = vpop.f32.mrb[0].mxu0
      %v499 = vadd.f32 0.0, %v498
      %v500 = vpop.f32.mrb[0].mxu0
      %v501 = vpop.f32.mrb[0].mxu0
      %v502 = vadd.f32 0.0, %v501
      %v503 = vpop.f32.mrb[0].mxu0
      %504 = vmatprep.mubr.bf16.mxu0 0
      %505 = vmatmul.mubr.bf16.gmra.mrb[0].mxu0 %v322
      %v506 = vpop.f32.mrb[0].mxu0
      %v507 = vadd.f32 0.0, %v506
      %v508 = vpop.f32.mrb[0].mxu0
      %v509 = vpop.f32.mrb[0].mxu0
      %v510 = vadd.f32 0.0, %v509
      %v511 = vpop.f32.mrb[0].mxu0
      %512 = vmatprep.mubr.bf16.mxu0 0
      %513 = vmatmul.mubr.bf16.gmra.mrb[0].mxu0 %v323
      %v514 = vpop.f32.mrb[0].mxu0
      %v515 = vadd.f32 0.0, %v514
      %v516 = vpop.f32.mrb[0].mxu0
      %v517 = vpop.f32.mrb[0].mxu0
      %v518 = vadd.f32 0.0, %v517
      %v519 = vpop.f32.mrb[0].mxu0
      %520 = vmatprep.mubr.bf16.mxu0 0
      %521 = vmatmul.mubr.bf16.gmra.mrb[0].mxu0 %v324
      %v522 = vpop.f32.mrb[0].mxu0
      %v523 = vadd.f32 0.0, %v522
      %v524 = vpop.f32.mrb[0].mxu0
      %v525 = vpop.f32.mrb[0].mxu0
      %v526 = vadd.f32 0.0, %v525
      %v527 = vpop.f32.mrb[0].mxu0
      %528 = vmatprep.mubr.bf16.mxu0 0
      %529 = vmatmul.mubr.bf16.gmra.mrb[0].mxu0 %v325
      %v530 = vpop.f32.mrb[0].mxu0
      %v531 = vadd.f32 0.0, %v530
      %v532 = vpop.f32.mrb[0].mxu0
      %v533 = vpop.f32.mrb[0].mxu0
      %v534 = vadd.f32 0.0, %v533
      %v535 = vpop.f32.mrb[0].mxu0
      %536 = vmatprep.mubr.bf16.mxu0 0
      %537 = vmatmul.mubr.bf16.gmra.mrb[0].mxu0 %v326
      %v538 = vpop.f32.mrb[0].mxu0
      %v539 = vadd.f32 0.0, %v538
      %v540 = vpop.f32.mrb[0].mxu0
      %v541 = vpop.f32.mrb[0].mxu0
      %v542 = vadd.f32 0.0, %v541
      %v543 = vpop.f32.mrb[0].mxu0
      %544 = vmatprep.mubr.bf16.mxu0 0
      %545 = vmatmul.mubr.bf16.gmra.mrb[0].mxu0 %v327
      %v546 = vpop.f32.mrb[0].mxu0
      %v547 = vadd.f32 0.0, %v546
      %v548 = vpop.f32.mrb[0].mxu0
      %v549 = vpop.f32.mrb[0].mxu0
      %v550 = vadd.f32 0.0, %v549
      %v551 = vpop.f32.mrb[0].mxu0
      %552 = vdwg.mxu0
      %v553 = vld [vmem:[%s2] sm:$0x1]
      %v555 = vlaneseq
      %v556 = vshrl.u32 %v555, 7
      %v557 = vsub.s32 0, %v556
      %v558 = vrot.slane %v553, %v557
      %v560 = vmul.f32 %v427, %v558
      %v561 = vmul.f32 %v430, %v558
      %v562 = vmul.f32 %v435, %v558
      %v563 = vmul.f32 %v438, %v558
      %v564 = vmul.f32 %v443, %v558
      %v565 = vmul.f32 %v446, %v558
      %v566 = vmul.f32 %v451, %v558
      %v567 = vmul.f32 %v454, %v558
      %v568 = vmul.f32 %v459, %v558
      %v569 = vmul.f32 %v462, %v558
      %v570 = vmul.f32 %v467, %v558
      %v571 = vmul.f32 %v470, %v558
      %v572 = vmul.f32 %v475, %v558
      %v573 = vmul.f32 %v478, %v558
      %v574 = vmul.f32 %v483, %v558
      %v575 = vmul.f32 %v486, %v558
      %v576 = vmul.f32 %v491, %v558
      %v577 = vmul.f32 %v494, %v558
      %v578 = vmul.f32 %v499, %v558
      %v579 = vmul.f32 %v502, %v558
      %v580 = vmul.f32 %v507, %v558
      %v581 = vmul.f32 %v510, %v558
      %v582 = vmul.f32 %v515, %v558
      %v583 = vmul.f32 %v518, %v558
      %v584 = vmul.f32 %v523, %v558
      %v585 = vmul.f32 %v526, %v558
      %v586 = vmul.f32 %v531, %v558
      %v587 = vmul.f32 %v534, %v558
      %v588 = vmul.f32 %v539, %v558
      %v589 = vmul.f32 %v542, %v558
      %v590 = vmul.f32 %v547, %v558
      %v591 = vmul.f32 %v550, %v558
      %v592 = vld [vmem:[%s3] sm:$0x1]
      %v594 = vlaneseq
      %v595 = vshrl.u32 %v594, 7
      %v596 = vsub.s32 0, %v595
      %v597 = vrot.slane %v592, %v596
      %v599 = vadd.f32 %v560, %v597
      %v600 = vadd.f32 %v561, %v597
      %v601 = vadd.f32 %v562, %v597
      %v602 = vadd.f32 %v563, %v597
      %v603 = vadd.f32 %v564, %v597
      %v604 = vadd.f32 %v565, %v597
      %v605 = vadd.f32 %v566, %v597
      %v606 = vadd.f32 %v567, %v597
      %v607 = vadd.f32 %v568, %v597
      %v608 = vadd.f32 %v569, %v597
      %v609 = vadd.f32 %v570, %v597
      %v610 = vadd.f32 %v571, %v597
      %v611 = vadd.f32 %v572, %v597
      %v612 = vadd.f32 %v573, %v597
      %v613 = vadd.f32 %v574, %v597
      %v614 = vadd.f32 %v575, %v597
      %v615 = vadd.f32 %v576, %v597
      %v616 = vadd.f32 %v577, %v597
      %v617 = vadd.f32 %v578, %v597
      %v618 = vadd.f32 %v579, %v597
      %v619 = vadd.f32 %v580, %v597
      %v620 = vadd.f32 %v581, %v597
      %v621 = vadd.f32 %v582, %v597
      %v622 = vadd.f32 %v583, %v597
      %v623 = vadd.f32 %v584, %v597
      %v624 = vadd.f32 %v585, %v597
      %v625 = vadd.f32 %v586, %v597
      %v626 = vadd.f32 %v587, %v597
      %v627 = vadd.f32 %v588, %v597
      %v628 = vadd.f32 %v589, %v597
      %v629 = vadd.f32 %v590, %v597
      %v630 = vadd.f32 %v591, %v597
      %v631 = vmax.f32 %v599, 0.0
      %v632 = vmax.f32 %v600, 0.0
      %v633 = vmax.f32 %v601, 0.0
      %v634 = vmax.f32 %v602, 0.0
      %v635 = vmax.f32 %v603, 0.0
      %v636 = vmax.f32 %v604, 0.0
      %v637 = vmax.f32 %v605, 0.0
      %v638 = vmax.f32 %v606, 0.0
      %v639 = vmax.f32 %v607, 0.0
      %v640 = vmax.f32 %v608, 0.0
      %v641 = vmax.f32 %v609, 0.0
      %v642 = vmax.f32 %v610, 0.0
      %v643 = vmax.f32 %v611, 0.0
      %v644 = vmax.f32 %v612, 0.0
      %v645 = vmax.f32 %v613, 0.0
      %v646 = vmax.f32 %v614, 0.0
      %v647 = vmax.f32 %v615, 0.0
      %v648 = vmax.f32 %v616, 0.0
      %v649 = vmax.f32 %v617, 0.0
      %v650 = vmax.f32 %v618, 0.0
      %v651 = vmax.f32 %v619, 0.0
      %v652 = vmax.f32 %v620, 0.0
      %v653 = vmax.f32 %v621, 0.0
      %v654 = vmax.f32 %v622, 0.0
      %v655 = vmax.f32 %v623, 0.0
      %v656 = vmax.f32 %v624, 0.0
      %v657 = vmax.f32 %v625, 0.0
      %v658 = vmax.f32 %v626, 0.0
      %v659 = vmax.f32 %v627, 0.0
      %v660 = vmax.f32 %v628, 0.0
      %v661 = vmax.f32 %v629, 0.0
      %v662 = vmax.f32 %v630, 0.0
      %v663 = vmax.f32 %v631, %v639
      %v664 = vmax.f32 %v632, %v640
      %v665 = vmax.f32 %v633, %v641
      %v666 = vmax.f32 %v634, %v642
      %v667 = vmax.f32 %v635, %v643
      %v668 = vmax.f32 %v636, %v644
      %v669 = vmax.f32 %v637, %v645
      %v670 = vmax.f32 %v638, %v646
      %v671 = vmax.f32 %v647, %v655
      %v672 = vmax.f32 %v648, %v656
      %v673 = vmax.f32 %v649, %v657
      %v674 = vmax.f32 %v650, %v658
      %v675 = vmax.f32 %v651, %v659
      %v676 = vmax.f32 %v652, %v660
      %v677 = vmax.f32 %v653, %v661
      %v678 = vmax.f32 %v654, %v662
      %v679 = vmax.f32 %v663, %v671
      %v680 = vmax.f32 %v664, %v672
      %v681 = vmax.f32 %v665, %v673
      %v682 = vmax.f32 %v666, %v674
      %v683 = vmax.f32 %v667, %v675
      %v684 = vmax.f32 %v668, %v676
      %v685 = vmax.f32 %v669, %v677
      %v686 = vmax.f32 %v670, %v678
      %vm687 = vcmask 64512
      %688 = vst.msk [vmem:[%s197] sm:$0xff] %vm687, %v679
      %689 = vst.msk [vmem:[%s197 + $0x8] sm:$0xff] %vm687, %v680
      %690 = vst.msk [vmem:[%s197 + $0x10] sm:$0xff] %vm687, %v681
      %691 = vst.msk [vmem:[%s197 + $0x18] sm:$0xff] %vm687, %v682
      %692 = vst.msk [vmem:[%s197 + $0x20] sm:$0xff] %vm687, %v683
      %693 = vst.msk [vmem:[%s197 + $0x28] sm:$0xff] %vm687, %v684
      %694 = vst.msk [vmem:[%s197 + $0x30] sm:$0xff] %vm687, %v685
      %695 = vst.msk [vmem:[%s197 + $0x38] sm:$0xff] %vm687, %v686
      %s696 = smul.u32 8, %s15
      %p697 = scmp.lt.s32.totalorder %s696, 15
      %s698 = scalar_select %p697, %s696, 15
      %s699 = smul.addr %s698, 8
      %s700 = scalar_lea.vmem %s4, %s699
      // Predicated region
      $region37: #{block_forward.1} parent=35 // pred_check
        %p701 = pneg %p122
      $region38: #{block_forward.1} parent=35 // pred_check_branch
        %703 = sbr.rel (%p701) target = $region40
      $region39: #{block_forward.1} parent=35 // pred_region
        %s704 = smul.u32 8, %s15
      $region40: #{block_forward.1} parent=35 // pred_fallthru
        _
    $region36: #{block_forward.1} parent=5 // pred_fallthru
      _
    %p705 = scmp.le.s32.totalorder 2, %s10
    // Predicated region
    $region41: #{block_forward.1} parent=5 // pred_check
      %p706 = pneg %p705
    $region42: #{block_forward.1} parent=5 // pred_check_branch
      %708 = sbr.rel (%p706) target = $region44
    $region43: #{block_forward.1} parent=5 // pred_region
      %s709 = ssub.s32 %s10, 2
      // Predicated region
      $region45: #{block_forward.1} parent=43 // pred_check
        %p710 = pneg %p128
      $region46: #{block_forward.1} parent=43 // pred_check_branch
        %712 = sbr.rel (%p710) target = $region48
      $region47: #{block_forward.1} parent=43 // pred_region
        %s713 = smul.u32 8, %s16
        %p714 = scmp.lt.s32.totalorder %s713, 15
        %s715 = scalar_select %p714, %s713, 15
        %s716 = smul.addr %s715, 8
        %s717 = scalar_lea.vmem %s4, %s716
      $region48: #{block_forward.1} parent=43 // pred_fallthru
        _
    $region44: #{block_forward.1} parent=5 // pred_fallthru
      _
  $region6: #{block_forward.1} parent=0 // loop_footer
    %s14 = sadd.s32 1, %s10
  $region7: #{block_forward.1} parent=0 // loop_footer_branch
    %9 = sbr.rel target = $region3
  $region8: #{block_forward.1} parent=0 // loop_exit
    _

</llo_original>
